<compile_context>
chip_gen: v7x
topology: tpu7x:2x2x1
jax: 0.10.0
libtpu: 0.0.40
codegen_flags: <defaults>
</compile_context>

<pallas_src>
import jax
import jax.numpy as jnp
from jax import lax
from jax.experimental import pallas as pl
from jax.experimental.pallas import tpu as pltpu

ALPHA = 0.75      # focal alpha
GAMMA = 2.0       # baked in (explicit square)
W_BCE = 1.0       # weights['bce']
W_FOCAL = 1.0     # weights['focal']

_LANES = 128
_TR_MAX = 2048    # rows per tile: 2048*128*4B = 1 MiB per input per buffer


def _elem_contrib(x, t, binary_targets, in_kernel):
    """Per-element bce * (W_BCE + W_FOCAL*alpha*(1-pt)^2), all f32."""
    e = jnp.exp(-jnp.abs(x))                       # EUP op 1
    bce = jnp.maximum(x, 0.0) - x * t + jnp.log1p(e)   # EUP op 2 (log1p)
    if binary_targets:
        # pt = exp(-bce) == sigmoid(x) for t==1, 1-sigmoid(x) for t==0.
        denom = 1.0 + e
        if in_kernel:
            r = pl.reciprocal(denom, approx=True)  # EUP vrcp, nearly free
            r = r * (2.0 - denom * r)              # one Newton step (VPU)
        else:
            r = 1.0 / denom
        sig = jnp.where(x >= 0.0, r, 1.0 - r)      # sigmoid(x)
        pt = jnp.where(t > 0.5, sig, 1.0 - sig)
        one_m_pt = 1.0 - pt
    else:
        one_m_pt = 1.0 - jnp.exp(-bce)             # EUP op 3 (soft labels)
    return bce * (W_BCE + (W_FOCAL * ALPHA) * (one_m_pt * one_m_pt))


def _make_kernel(rows, tr, tph, acc_rows, covered, binary_targets):
    clean_limit = rows // tr          # tiles fully inside [0, rows)
    need_mask = covered > rows        # static: any ragged / overhang tile?

    def kernel(x_ref, t_ref, o_ref, acc_ref):
        p = pl.program_id(0)
        k = pl.program_id(1)

        @pl.when(k == 0)
        def _():
            acc_ref[...] = jnp.zeros_like(acc_ref)

        x = x_ref[...].astype(jnp.float32)
        t = t_ref[...].astype(jnp.float32)
        contrib = _elem_contrib(x, t, binary_targets, in_kernel=True)

        def _acc(v):
            # Pure VPU vreg adds; keeps (8,128) tiles intact.
            acc_ref[...] += v.reshape(tr // acc_rows, acc_rows, _LANES).sum(axis=0)

        if need_mask:
            g = p * tph + k           # global tile index (unclamped)

            @pl.when(g < clean_limit)
            def _():
                _acc(contrib)

            @pl.when(g >= clean_limit)
            def _():
                # Row-level mask only on the ragged / overhang tile(s).
                row_ids = g * tr + lax.broadcasted_iota(
                    jnp.int32, (tr, _LANES), 0)
                _acc(jnp.where(row_ids < rows, contrib, 0.0))
        else:
            _acc(contrib)

        @pl.when(k == pl.num_programs(1) - 1)
        def _():
            # One sublane (XLU) reduce per parallel half; lane-dense store.
            o_ref[...] = jnp.sum(acc_ref[...], axis=0, keepdims=True)

    return kernel


def combined_loss(inputs, targets, binary_targets=True):
    """inputs: logits (any shape); targets: same shape. Returns scalar loss."""
    assert inputs.shape == targets.shape
    n = inputs.size

    xf = inputs.reshape(-1)
    tf = targets.reshape(-1)

    rows = n // _LANES
    n_main = rows * _LANES

    # Lane tail (< 128 elements): plain jnp epilogue, negligible.
    tail_sum = jnp.float32(0.0)
    if n_main < n:
        # TODO(synk): the prefix slice below copies the main slab when
        # n % 128 != 0; typical NCHW sizes are 128-aligned so this is rare.
        xt = xf[n_main:].astype(jnp.float32)
        tt = tf[n_main:].astype(jnp.float32)
        tail_sum = jnp.sum(_elem_contrib(xt, tt, binary_targets, in_kernel=False))
        xf = xf[:n_main]
        tf = tf[:n_main]

    if rows == 0:
        return tail_sum / jnp.float32(n)

    x2d = xf.reshape(rows, _LANES)   # free reshape, native dtype
    t2d = tf.reshape(rows, _LANES)

    # Sublane granularity matched to the narrowest input dtype (f32->8,
    # bf16->16, int8/bool->32) so DMA / in-register unpack stay unmasked.
    gran = max(8, 32 // min(x2d.dtype.itemsize, t2d.dtype.itemsize))

    if rows < gran:
        tr, n_par, tph = rows, 1, 1            # single full-dim block
    else:
        tr = min(_TR_MAX, (rows // gran) * gran)
        n_tiles = pl.cdiv(rows, tr)
        n_par = 2 if (n_tiles >= 2 and rows >= 64) else 1
        tph = pl.cdiv(n_tiles, n_par)

    total_tiles = n_par * tph
    covered = total_tiles * tr
    max_block = pl.cdiv(rows, tr) - 1

    # Accumulator sublane width: widest of {32,16,8} dividing tr.
    if tr % 32 == 0:
        acc_rows = 32
    elif tr % 16 == 0:
        acc_rows = 16
    elif tr % 8 == 0:
        acc_rows = 8
    else:
        acc_rows = tr

    kernel = _make_kernel(rows, tr, tph, acc_rows, covered, binary_targets)

    def in_map(p, k):
        # Clamp the (at most one) overhang tile's block index; its
        # contribution is zero-masked in-kernel.
        return (jnp.minimum(p * tph + k, max_block), 0)

    partials = pl.pallas_call(
        kernel,
        out_shape=jax.ShapeDtypeStruct((n_par, _LANES), jnp.float32),
        grid_spec=pltpu.PrefetchScalarGridSpec(
            num_scalar_prefetch=0,
            grid=(n_par, tph),
            in_specs=[
                pl.BlockSpec((tr, _LANES), in_map),
                pl.BlockSpec((tr, _LANES), in_map),
            ],
            out_specs=pl.BlockSpec((1, _LANES), lambda p, k: (p, 0)),
            scratch_shapes=[pltpu.VMEM((acc_rows, _LANES), jnp.float32)],
        ),
        compiler_params=pltpu.CompilerParams(
            dimension_semantics=("parallel", "arbitrary"),
        ),
    )(x2d, t2d)

    # Tiny epilogue: n_par*128 partial sums + lane tail -> scalar mean.
    return (jnp.sum(partials) + tail_sum) / jnp.float32(n)


def _reference(inputs, targets):
    x = inputs.astype(jnp.float32)
    t = targets.astype(jnp.float32)
    bce = jnp.maximum(x, 0.0) - x * t + jnp.log1p(jnp.exp(-jnp.abs(x)))
    one_m_pt = 1.0 - jnp.exp(-bce)
    focal = ALPHA * (one_m_pt ** 2) * bce
    return W_BCE * jnp.mean(bce) + W_FOCAL * jnp.mean(focal)


if __name__ == "__main__":
    key = jax.random.PRNGKey(0)
    k1, k2 = jax.random.split(key)
    # NCHW logits and binary mask targets, small shapes.
    x = jax.random.normal(k1, (2, 4, 16, 16), dtype=jnp.float32)
    t = (jax.random.uniform(k2, (2, 4, 16, 16)) > 0.5).astype(jnp.float32)

    loss = combined_loss(x, t)
    jax.block_until_ready(loss)

    ref = _reference(x, t)
    assert jnp.allclose(loss, ref, rtol=1e-5, atol=1e-5), (loss, ref)
    print("KERNEL_OK")
</pallas_src>

<mosaic_0001>
module attributes {stable_mosaic.version = 11 : i64} {
  func.func @kernel(%arg0: i32, %arg1: i32, %arg2: memref<16x128xf32, #tpu.memory_space<vmem>>, %arg3: memref<16x128xf32, #tpu.memory_space<vmem>>, %arg4: memref<1x128xf32, #tpu.memory_space<vmem>>, %arg5: memref<16x128xf32, #tpu.memory_space<vmem>>) attributes {dimension_semantics = [#tpu.dimension_semantics<parallel>, #tpu.dimension_semantics<arbitrary>], iteration_bounds = array<i64: 1, 1>, scalar_prefetch = 0 : i64, scratch_operands = 1 : i64, tpu.core_type = #tpu.core_type<tc>, window_params = [{transform_indices = @transform_0, window_bounds = array<i64: 16, 128>}, {transform_indices = @transform_1, window_bounds = array<i64: 16, 128>}, {transform_indices = @transform_2, window_bounds = array<i64: 1, 128>}]} {
    %c0_i32 = arith.constant 0 : i32
    %0 = arith.cmpi eq, %arg1, %c0_i32 : i32
    %1 = arith.extui %0 : i1 to i32
    %c0_i32_0 = arith.constant 0 : i32
    %2 = arith.cmpi ne, %1, %c0_i32_0 : i32
    scf.if %2 {
      %cst_21 = arith.constant 0.000000e+00 : f32
      %48 = vector.broadcast %cst_21 : f32 to vector<16x128xf32>
      %c0_22 = arith.constant 0 : index
      %c0_23 = arith.constant 0 : index
      %49 = vector.load %arg5[%c0_22, %c0_23] : memref<16x128xf32, #tpu.memory_space<vmem>>, vector<16x128xf32>
      tpu.vector_store %arg5[%c0_22, %c0_23], %48 {strides = array<i32>} : memref<16x128xf32, #tpu.memory_space<vmem>>, vector<16x128xf32>,
    } else {
    }
    %c0 = arith.constant 0 : index
    %c0_1 = arith.constant 0 : index
    %3 = vector.load %arg2[%c0, %c0_1] : memref<16x128xf32, #tpu.memory_space<vmem>>, vector<16x128xf32>
    %c0_2 = arith.constant 0 : index
    %c0_3 = arith.constant 0 : index
    %4 = vector.load %arg3[%c0_2, %c0_3] : memref<16x128xf32, #tpu.memory_space<vmem>>, vector<16x128xf32>
    %5 = math.absf %3 : vector<16x128xf32>
    %cst = arith.constant 0.000000e+00 : f32
    %6 = vector.broadcast %cst : f32 to vector<16x128xf32>
    %7 = arith.subf %6, %5 : vector<16x128xf32>
    %8 = math.exp %7 : vector<16x128xf32>
    %cst_4 = arith.constant 0.000000e+00 : f32
    %9 = vector.broadcast %cst_4 : f32 to vector<16x128xf32>
    %10 = arith.maximumf %3, %9 : vector<16x128xf32>
    %11 = arith.mulf %3, %4 : vector<16x128xf32>
    %12 = arith.subf %10, %11 : vector<16x128xf32>
    %13 = math.log1p %8 : vector<16x128xf32>
    %14 = arith.addf %12, %13 : vector<16x128xf32>
    %cst_5 = arith.constant 1.000000e+00 : f32
    %15 = vector.broadcast %cst_5 : f32 to vector<16x128xf32>
    %16 = arith.addf %15, %8 : vector<16x128xf32>
    %17 = tpu.reciprocal %16 {approx = true} : vector<16x128xf32> -> vector<16x128xf32>
    %18 = arith.mulf %16, %17 : vector<16x128xf32>
    %cst_6 = arith.constant 2.000000e+00 : f32
    %19 = vector.broadcast %cst_6 : f32 to vector<16x128xf32>
    %20 = arith.subf %19, %18 : vector<16x128xf32>
    %21 = arith.mulf %17, %20 : vector<16x128xf32>
    %cst_7 = arith.constant 0.000000e+00 : f32
    %22 = vector.broadcast %cst_7 : f32 to vector<16x128xf32>
    %23 = arith.cmpf oge, %3, %22 : vector<16x128xf32>
    %cst_8 = arith.constant 1.000000e+00 : f32
    %24 = vector.broadcast %cst_8 : f32 to vector<16x128xf32>
    %25 = arith.subf %24, %21 : vector<16x128xf32>
    %26 = arith.select %23, %21, %25 : vector<16x128xi1>, vector<16x128xf32>
    %cst_9 = arith.constant 5.000000e-01 : f32
    %27 = vector.broadcast %cst_9 : f32 to vector<16x128xf32>
    %28 = arith.cmpf ogt, %4, %27 : vector<16x128xf32>
    %cst_10 = arith.constant 1.000000e+00 : f32
    %29 = vector.broadcast %cst_10 : f32 to vector<16x128xf32>
    %30 = arith.subf %29, %26 : vector<16x128xf32>
    %31 = arith.select %28, %26, %30 : vector<16x128xi1>, vector<16x128xf32>
    %cst_11 = arith.constant 1.000000e+00 : f32
    %32 = vector.broadcast %cst_11 : f32 to vector<16x128xf32>
    %33 = arith.subf %32, %31 : vector<16x128xf32>
    %34 = arith.mulf %33, %33 : vector<16x128xf32>
    %cst_12 = arith.constant 7.500000e-01 : f32
    %35 = vector.broadcast %cst_12 : f32 to vector<16x128xf32>
    %36 = arith.mulf %35, %34 : vector<16x128xf32>
    %cst_13 = arith.constant 1.000000e+00 : f32
    %37 = vector.broadcast %cst_13 : f32 to vector<16x128xf32>
    %38 = arith.addf %37, %36 : vector<16x128xf32>
    %39 = arith.mulf %14, %38 : vector<16x128xf32>
    %c0_14 = arith.constant 0 : index
    %c0_15 = arith.constant 0 : index
    %40 = vector.load %arg5[%c0_14, %c0_15] : memref<16x128xf32, #tpu.memory_space<vmem>>, vector<16x128xf32>
    %41 = vector.shape_cast %39 : vector<16x128xf32> to vector<1x16x128xf32>
    %cst_16 = arith.constant dense<0.000000e+00> : vector<16x128xf32>
    %42 = vector.multi_reduction <add>, %41, %cst_16 [0] : vector<1x16x128xf32> to vector<16x128xf32>
    %43 = arith.addf %40, %42 : vector<16x128xf32>
    %c0_17 = arith.constant 0 : index
    %c0_18 = arith.constant 0 : index
    %44 = vector.load %arg5[%c0_17, %c0_18] : memref<16x128xf32, #tpu.memory_space<vmem>>, vector<16x128xf32>
    tpu.vector_store %arg5[%c0_17, %c0_18], %43 {strides = array<i32>} : memref<16x128xf32, #tpu.memory_space<vmem>>, vector<16x128xf32>,
    %c0_i32_19 = arith.constant 0 : i32
    %45 = arith.cmpi eq, %arg1, %c0_i32_19 : i32
    %46 = arith.extui %45 : i1 to i32
    %c0_i32_20 = arith.constant 0 : i32
    %47 = arith.cmpi ne, %46, %c0_i32_20 : i32
    scf.if %47 {
      %c0_21 = arith.constant 0 : index
      %c0_22 = arith.constant 0 : index
      %48 = vector.load %arg5[%c0_21, %c0_22] : memref<16x128xf32, #tpu.memory_space<vmem>>, vector<16x128xf32>
      %cst_23 = arith.constant dense<0.000000e+00> : vector<128xf32>
      %49 = vector.multi_reduction <add>, %48, %cst_23 [0] : vector<16x128xf32> to vector<128xf32>
      %50 = vector.shape_cast %49 : vector<128xf32> to vector<1x128xf32>
      %c0_24 = arith.constant 0 : index
      %c0_25 = arith.constant 0 : index
      %51 = vector.load %arg4[%c0_24, %c0_25] : memref<1x128xf32, #tpu.memory_space<vmem>>, vector<1x128xf32>
      tpu.vector_store %arg4[%c0_24, %c0_25], %50 {strides = array<i32>} : memref<1x128xf32, #tpu.memory_space<vmem>>, vector<1x128xf32>,
    } else {
    }
    return
  }
  func.func @transform_0(%arg0: i32, %arg1: i32) -> (i32, i32) {
    %c1_i32 = arith.constant 1 : i32
    %0 = arith.muli %arg0, %c1_i32 : i32
    %1 = arith.addi %0, %arg1 : i32
    %c0_i32 = arith.constant 0 : i32
    %2 = arith.minsi %1, %c0_i32 : i32
    %c0_i32_0 = arith.constant 0 : i32
    %c0_i32_1 = arith.constant 0 : i32
    return %2, %c0_i32_0 : i32, i32
  }
  func.func @transform_1(%arg0: i32, %arg1: i32) -> (i32, i32) {
    %c1_i32 = arith.constant 1 : i32
    %0 = arith.muli %arg0, %c1_i32 : i32
    %1 = arith.addi %0, %arg1 : i32
    %c0_i32 = arith.constant 0 : i32
    %2 = arith.minsi %1, %c0_i32 : i32
    %c0_i32_0 = arith.constant 0 : i32
    %c0_i32_1 = arith.constant 0 : i32
    return %2, %c0_i32_0 : i32, i32
  }
  func.func @transform_2(%arg0: i32, %arg1: i32) -> (i32, i32) {
    %c0_i32 = arith.constant 0 : i32
    %c0_i32_0 = arith.constant 0 : i32
    return %arg0, %c0_i32 : i32, i32
  }
}

</mosaic_0001>

<llo_original>
// kernel: tpu_custom_call.1
$region0: #{tpu_custom_call.1}
  #allocation0 [shape = 'u32[]', space=smem, size = 0x4, offset = 0x4, fixed_abs, tag = 'smem constant byte address 0x4 - core index']
  #allocation1 [shape = 'u32[144,128]{1,0:T(1,128)}', space=vmem, size = 0x12000, scoped, tag = 'internal scratch']
  #allocation2 [shape = 'f32[16,128]{1,0:T(8,128)}', space=vmem, size = 0x2000, scoped, tag = 'scratch operand']
  %s0 = inlined_call_operand.hbm [shape: f32[16,128], index: 0, kind: input, shape index: {}]
  %s1 = inlined_call_operand.hbm [shape: f32[16,128], index: 1, kind: input, shape index: {}]
  %s2 = inlined_call_operand.hbm [shape: f32[1,128], index: 2, kind: output, shape index: {}]
  %s3 = sld [smem:[#allocation0]]
  $region34: #{tpu_custom_call.1} parent=0
    _
  %s5 = ssub.s32 1, %s3
  %s6 = scalar_select 0, %s5, %s3
  $region1: #{tpu_custom_call.1} parent=0
    #allocation3 [shape = 'u8[8192]{0}', space=vmem, size = 0x2000, scoped, tag = 'input window, operand 0, single buffered']
    #allocation4 [shape = 's32[1]{0}', space=sflag, size = 0x4, scoped, tag = 'scoped memory for tpu_custom_call.1']
    #allocation5 [shape = 's32[1]{0}', space=sflag, size = 0x4, scoped, tag = 'scoped memory for tpu_custom_call.1']
    #allocation6 [shape = 'u8[8192]{0}', space=vmem, size = 0x2000, scoped, tag = 'input window, operand 1, single buffered']
    #allocation7 [shape = 's32[1]{0}', space=sflag, size = 0x4, scoped, tag = 'scoped memory for tpu_custom_call.1']
    #allocation8 [shape = 'u8[512]{0}', space=vmem, size = 0x400, scoped, tag = 'output window, operand 0, single buffered']
    %7 = vsyncpa [#allocation4], 0
    %8 = vsyncpa [#allocation7], 0
    %9 = vsyncpa [#allocation5], 0
    // Predicated region
    $region2: #{tpu_custom_call.1} parent=1 // pred_check
      _
    $region3: #{tpu_custom_call.1} parent=1 // pred_check_branch
      %11 = sbr.rel (0) target = $region5
    $region4: #{tpu_custom_call.1} parent=1 // pred_region
      %s12 = sadd.s32 0, 0
      %p13 = scmp.lt.s32.totalorder %s12, 0
      %s14 = scalar_select %p13, %s12, 0
      %s15 = smul.u32 2, %s14
      %s17 = ssub.s32 256, 256
      %18 = vsyncadd [#allocation4], %s17
      %s19 = smul.addr %s15, 128
      %s20 = scalar_lea.hbm %s0, %s19
      %s21 = sshll.u32 [#allocation3], 4
      %s22 = int_to_ptr.vmem [resolvable:$true] %s21
      %27 = dma.hbm_to_vmem [thread:$0]  %s20, 256, %s22, [#allocation4], 128, 128, 8
    $region5: #{tpu_custom_call.1} parent=1 // pred_fallthru
      _
    // Predicated region
    $region6: #{tpu_custom_call.1} parent=1 // pred_check
      _
    $region7: #{tpu_custom_call.1} parent=1 // pred_check_branch
      %29 = sbr.rel (0) target = $region9
    $region8: #{tpu_custom_call.1} parent=1 // pred_region
      %s30 = sadd.s32 0, 0
      %p31 = scmp.lt.s32.totalorder %s30, 0
      %s32 = scalar_select %p31, %s30, 0
      %s33 = smul.u32 2, %s32
      %s35 = ssub.s32 256, 256
      %36 = vsyncadd [#allocation7], %s35
      %s37 = smul.addr %s33, 128
      %s38 = scalar_lea.hbm %s1, %s37
      %s39 = sshll.u32 [#allocation6], 4
      %s40 = int_to_ptr.vmem [resolvable:$true] %s39
      %45 = dma.hbm_to_vmem [thread:$0]  %s38, 256, %s40, [#allocation7], 128, 128, 8
    $region9: #{tpu_custom_call.1} parent=1 // pred_fallthru
      _
    // Predicated region
    $region10: #{tpu_custom_call.1} parent=1 // pred_check
      _
    $region11: #{tpu_custom_call.1} parent=1 // pred_check_branch
      %47 = sbr.rel (0) target = $region13
    $region12: #{tpu_custom_call.1} parent=1 // pred_region
      %48 = dma.done [#allocation4], 256
    $region13: #{tpu_custom_call.1} parent=1 // pred_fallthru
      _
    // Predicated region
    $region14: #{tpu_custom_call.1} parent=1 // pred_check
      _
    $region15: #{tpu_custom_call.1} parent=1 // pred_check_branch
      %50 = sbr.rel (0) target = $region17
    $region16: #{tpu_custom_call.1} parent=1 // pred_region
      %51 = dma.done [#allocation7], 256
    $region17: #{tpu_custom_call.1} parent=1 // pred_fallthru
      _
    %s52 = sadd.s32 0, 0
    %p53 = scmp.lt.s32.totalorder %s52, 0
    %s54 = scalar_select %p53, %s52, 0
    %s55 = smul.u32 2, %s54
    %s56 = sadd.s32 0, 0
    %p57 = scmp.lt.s32.totalorder %s56, 0
    %s58 = scalar_select %p57, %s56, 0
    %s59 = smul.u32 2, %s58
    %p60 = scmp.eq.s32.totalorder 0, 0
    // Predicated region
    $region18: #{tpu_custom_call.1} parent=1 // pred_check
      %p61 = pneg %p60
    $region19: #{tpu_custom_call.1} parent=1 // pred_check_branch
      %63 = sbr.rel (%p61) target = $region21
    $region20: #{tpu_custom_call.1} parent=1 // pred_region
      %64 = vst [vmem:[#allocation2] sm:$0xff] 0.0
      %65 = vst [vmem:[#allocation2 + $0x8] sm:$0xff] 0.0
    $region21: #{tpu_custom_call.1} parent=1 // pred_fallthru
      _
    %v66 = vld [vmem:[#allocation3] sm:$0xff]
    %v67 = vld [vmem:[#allocation3 + $0x8] sm:$0xff]
    %v68 = vld [vmem:[#allocation6] sm:$0xff]
    %v69 = vld [vmem:[#allocation6 + $0x8] sm:$0xff]
    %v70 = vand.u32 2147483647, %v66
    %v71 = vand.u32 2147483647, %v67
    %v72 = vsub.f32 0.0, %v70
    %v73 = vsub.f32 0.0, %v71
    %v74 = vmul.f32 %v72, 1.442695
    %v75 = vpow.pop %v74
    %v76 = vmul.f32 %v73, 1.442695
    %v77 = vpow.pop %v76
    %v78 = vmax.f32 %v66, 0.0
    %v79 = vmax.f32 %v67, 0.0
    %v80 = vmul.f32 %v66, %v68
    %v81 = vmul.f32 %v67, %v69
    %v82 = vsub.f32 %v78, %v80
    %v83 = vsub.f32 %v79, %v81
    %v84 = vadd.f32 %v75, 1.0
    %v85 = vlog2.pop %v84
    %v86 = vmul.f32 %v85, 0.6931472
    %v87 = vmul.f32 -0.5, %v75
    %v88 = vadd.f32 %v87, 1.0
    %v89 = vmul.f32 %v88, %v75
    %v90 = vand.u32 2147483647, %v75
    %vm91 = vcmp.lt.f32.partialorder %v90, 0.0004427343
    %v92 = vsel %vm91, %v89, %v86
    %v93 = vadd.f32 %v77, 1.0
    %v94 = vlog2.pop %v93
    %v95 = vmul.f32 %v94, 0.6931472
    %v96 = vmul.f32 -0.5, %v77
    %v97 = vadd.f32 %v96, 1.0
    %v98 = vmul.f32 %v97, %v77
    %v99 = vand.u32 2147483647, %v77
    %vm100 = vcmp.lt.f32.partialorder %v99, 0.0004427343
    %v101 = vsel %vm100, %v98, %v95
    %v102 = vadd.f32 %v82, %v92
    %v103 = vadd.f32 %v83, %v101
    %v104 = vadd.f32 %v75, 1.0
    %v105 = vadd.f32 %v77, 1.0
    %v106 = vrcp.pop %v104
    %v107 = vrcp.pop %v105
    %v108 = vmul.f32 %v104, %v106
    %v109 = vmul.f32 %v105, %v107
    %v110 = vsub.f32 2.0, %v108
    %v111 = vsub.f32 2.0, %v109
    %v112 = vmul.f32 %v106, %v110
    %v113 = vmul.f32 %v107, %v111
    %vm114 = vcmp.ge.f32.partialorder %v66, 0.0
    %vm115 = vcmp.ge.f32.partialorder %v67, 0.0
    %v116 = vsub.f32 1.0, %v112
    %v117 = vsub.f32 1.0, %v113
    %v118 = vsel %vm114, %v112, %v116
    %v119 = vsel %vm115, %v113, %v117
    %vm120 = vcmp.gt.f32.partialorder %v68, 0.5
    %vm121 = vcmp.gt.f32.partialorder %v69, 0.5
    %v122 = vsub.f32 1.0, %v118
    %v123 = vsub.f32 1.0, %v119
    %v124 = vsel %vm120, %v118, %v122
    %v125 = vsel %vm121, %v119, %v123
    %v126 = vsub.f32 1.0, %v124
    %v127 = vsub.f32 1.0, %v125
    %v128 = vmul.f32 %v126, %v126
    %v129 = vmul.f32 %v127, %v127
    %v130 = vmul.f32 %v128, 0.75
    %v131 = vmul.f32 %v129, 0.75
    %v132 = vadd.f32 %v130, 1.0
    %v133 = vadd.f32 %v131, 1.0
    %v134 = vmul.f32 %v102, %v132
    %v135 = vmul.f32 %v103, %v133
    %v136 = vld [vmem:[#allocation2] sm:$0xff]
    %v137 = vld [vmem:[#allocation2 + $0x8] sm:$0xff]
    %v138 = vadd.f32 %v134, 0.0
    %v139 = vadd.f32 %v135, 0.0
    %v140 = vadd.f32 %v136, %v138
    %v141 = vadd.f32 %v137, %v139
    %142 = vst [vmem:[#allocation2] sm:$0xff] %v140
    %143 = vst [vmem:[#allocation2 + $0x8] sm:$0xff] %v141
    // Predicated region
    $region22: #{tpu_custom_call.1} parent=1 // pred_check
      %p144 = pneg %p60
    $region23: #{tpu_custom_call.1} parent=1 // pred_check_branch
      %146 = sbr.rel (%p144) target = $region25
    $region24: #{tpu_custom_call.1} parent=1 // pred_region
      %v147 = vld [vmem:[#allocation2] sm:$0xff]
      %v148 = vld [vmem:[#allocation2 + $0x8] sm:$0xff]
      %v149 = vadd.f32 %v147, %v148
      %v150 = vrot.slane %v149, 4
      %v151 = vadd.f32 %v149, %v150
      %v152 = vrot.slane %v151, 2
      %v153 = vadd.f32 %v151, %v152
      %v154 = vrot.slane %v153, 1
      %v155 = vadd.f32 %v153, %v154
      %156 = vst [vmem:[#allocation8] sm:$0x1] %v155
    $region25: #{tpu_custom_call.1} parent=1 // pred_fallthru
      _
    // Predicated region
    $region26: #{tpu_custom_call.1} parent=1 // pred_check
      _
    $region27: #{tpu_custom_call.1} parent=1 // pred_check_branch
      %158 = sbr.rel (0) target = $region29
    $region28: #{tpu_custom_call.1} parent=1 // pred_region
      %s160 = ssub.s32 16, 16
      %161 = vsyncadd [#allocation5], %s160
      %s163 = sshll.u32 [#allocation8], 4
      %s164 = int_to_ptr.vmem [resolvable:$true] %s163
      %166 = dma.vmem_to_hbm [thread:$0]  %s164, 16, %s2, [#allocation5]
    $region29: #{tpu_custom_call.1} parent=1 // pred_fallthru
      _
    // Predicated region
    $region30: #{tpu_custom_call.1} parent=1 // pred_check
      _
    $region31: #{tpu_custom_call.1} parent=1 // pred_check_branch
      %168 = sbr.rel (0) target = $region33
    $region32: #{tpu_custom_call.1} parent=1 // pred_region
      %169 = dma.done [#allocation5], 16
    $region33: #{tpu_custom_call.1} parent=1 // pred_fallthru
      _
    %170 = vsyncpa [#allocation4], 1
    %171 = vsyncpa [#allocation7], 1
    %172 = vsyncpa [#allocation5], 1

</llo_original>
